<compile_context>
chip_gen: v7x
topology: tpu7x:2x2x1
jax: 0.10.0
libtpu: 0.0.40
codegen_flags: <defaults>
</compile_context>

<pallas_src>
import functools

import jax
import jax.numpy as jnp
from jax import lax
from jax.experimental import pallas as pl
from jax.experimental.pallas import tpu as pltpu


def _vmem_limit_bytes():
    """Per-generation VMEM budget (v7x: 64 MiB/TC -> ~48 MiB; v5e/v6e: ~100 MiB)."""
    try:
        cap = int(pltpu.get_tpu_info().vmem_capacity_bytes)
    except Exception:
        cap = 64 * 1024 * 1024  # conservative (v7x-sized) fallback
    return int(min(max(cap - 16 * 1024 * 1024, 32 * 1024 * 1024), 100 * 1024 * 1024))


def _pick_tb(b, c, itemsize, h, w, hp, wp, oh, ow, budget):
    """Batch-block size: biggest TB (divisor of B) that fits the VMEM budget."""
    # double-buffered input + output blocks (pipeline) + single f32 padded scratch
    per_plane = 2 * (h * w + oh * ow) * itemsize + hp * wp * 4
    tb = int(max(1, min(b, int(budget * 0.6) // max(per_plane, 1))))
    while b % tb:
        tb -= 1
    # v7x megacore: keep >= 2 grid steps so both TensorCores get work.
    if c * (b // tb) < 2 and tb > 1:
        tb = max(1, tb // 2)
        while b % tb:
            tb -= 1
    return tb


def _pick_tr(oh, ow):
    """Output-row tile so the live f32 accumulator stays around ~8 vregs."""
    tr = max(8, (8 * 1024) // max(ow, 128) // 8 * 8)
    return min(tr, oh)


def _dwconv_kernel(x_ref, w_ref, b_ref, o_ref, xpad_ref, *,
                   tb, h, w, kh, kw, sh, sw, dh, dw, ph, pw, oh, ow, tr):
    # x_ref:    (TB, 1, H, W)      unpadded input planes for TB batches, 1 channel
    # w_ref:    (C*KH*KW,) f32     flattened depthwise weights (SMEM scalars)
    # b_ref:    (C,)       f32     bias (SMEM scalars)
    # o_ref:    (TB, 1, OH, OW)    output planes
    # xpad_ref: (TB, Hp, Wp) f32   VMEM scratch holding the zero-padded planes
    c = pl.program_id(0)
    taps = kh * kw
    hp = h + 2 * ph
    wp = w + 2 * pw
    f32 = jnp.float32

    # ---- fused zero-padding: build padded planes in VMEM (no HBM pad pass) ----
    if ph > 0:
        xpad_ref[:, pl.ds(0, ph), :] = jnp.zeros((tb, ph, wp), f32)
        xpad_ref[:, pl.ds(ph + h, ph), :] = jnp.zeros((tb, ph, wp), f32)
    if pw > 0:
        xpad_ref[:, :, pl.ds(0, pw)] = jnp.zeros((tb, hp, pw), f32)
        xpad_ref[:, :, pl.ds(pw + w, pw)] = jnp.zeros((tb, hp, pw), f32)
    xpad_ref[:, pl.ds(ph, h), pl.ds(pw, w)] = x_ref[:, 0, :, :].astype(f32)

    # ---- hoist per-channel scalars (SMEM reads) out of all loops ----
    wv = [w_ref[c * taps + t] for t in range(taps)]
    bias_c = b_ref[c]

    # ---- one plane per loop step; row-tiled f32 accumulation in vregs ----
    @pl.loop(0, tb)
    def _(n):
        for r0 in range(0, oh, tr):
            trows = min(tr, oh - r0)
            acc = jnp.full((trows, ow), bias_c, dtype=f32)
            for i in range(kh):
                rstart = r0 * sh + i * dh
                rows = (pl.ds(rstart, trows) if sh == 1
                        else pl.ds(rstart, trows, stride=sh))
                for j in range(kw):
                    cstart = j * dw
                    cols = (pl.ds(cstart, ow) if sw == 1
                            else pl.ds(cstart, ow, stride=sw))
                    acc = acc + xpad_ref[n, rows, cols] * wv[i * kw + j]
            o_ref[n, 0, pl.ds(r0, trows), :] = acc.astype(o_ref.dtype)


def depthwise_conv2d(x_nchw, weight, bias=None, *, stride=(1, 1), padding=(0, 0),
                     dilation=(1, 1)):
    """Depthwise conv2d matching torch.nn.Conv2d(groups=C, padding_mode='zeros').

    x_nchw: (B, C, H, W)
    weight: (C, 1, KH, KW)   (PyTorch depthwise layout)
    bias:   (C,) or None
    returns (B, C, OH, OW)
    """
    def _pair(v):
        return (v, v) if isinstance(v, int) else tuple(v)

    b, c, h, w = x_nchw.shape
    kh, kw = int(weight.shape[2]), int(weight.shape[3])
    sh, sw = _pair(stride)
    ph, pw = _pair(padding)
    dh, dw = _pair(dilation)

    oh = (h + 2 * ph - dh * (kh - 1) - 1) // sh + 1
    ow = (w + 2 * pw - dw * (kw - 1) - 1) // sw + 1
    hp, wp = h + 2 * ph, w + 2 * pw

    itemsize = jnp.dtype(x_nchw.dtype).itemsize
    budget = _vmem_limit_bytes()
    tb = _pick_tb(b, c, itemsize, h, w, hp, wp, oh, ow, budget)
    tr = _pick_tr(oh, ow)

    # Scalars for SMEM: flattened per-channel taps and bias, in f32.
    w_flat = weight[:, 0, :, :].reshape(c * kh * kw).astype(jnp.float32)
    if bias is None:
        b_vec = jnp.zeros((c,), jnp.float32)
    else:
        b_vec = bias.astype(jnp.float32)

    kern = functools.partial(_dwconv_kernel, tb=tb, h=h, w=w, kh=kh, kw=kw,
                             sh=sh, sw=sw, dh=dh, dw=dw, ph=ph, pw=pw,
                             oh=oh, ow=ow, tr=tr)

    out = pl.pallas_call(
        kern,
        out_shape=jax.ShapeDtypeStruct((b, c, oh, ow), x_nchw.dtype),
        grid_spec=pltpu.PrefetchScalarGridSpec(
            num_scalar_prefetch=0,
            grid=(c, b // tb),                      # channel outermost
            in_specs=[
                pl.BlockSpec((tb, 1, h, w), lambda ci, bi: (bi, ci, 0, 0)),
                pl.BlockSpec(memory_space=pltpu.MemorySpace.SMEM),
                pl.BlockSpec(memory_space=pltpu.MemorySpace.SMEM),
            ],
            out_specs=pl.BlockSpec((tb, 1, oh, ow), lambda ci, bi: (bi, ci, 0, 0)),
            scratch_shapes=[pltpu.VMEM((tb, hp, wp), jnp.float32)],
        ),
        compiler_params=pltpu.CompilerParams(
            dimension_semantics=("parallel", "parallel"),
            vmem_limit_bytes=budget,
        ),
    )(x_nchw, w_flat, b_vec)
    return out


if __name__ == "__main__":
    key = jax.random.PRNGKey(0)
    B, C, H, W = 2, 4, 16, 16
    KH = KW = 3
    stride = (1, 1)
    padding = (1, 1)
    dilation = (1, 1)

    kx, k_w, k_b = jax.random.split(key, 3)
    x = jax.random.normal(kx, (B, C, H, W), dtype=jnp.float32)
    # Deterministic Conv2d parameters (shapes as in the module __init__):
    # weight: (C, 1, KH, KW), bias: (C,)
    weight = jax.random.normal(k_w, (C, 1, KH, KW), dtype=jnp.float32) * 0.1
    bias = jax.random.normal(k_b, (C,), dtype=jnp.float32) * 0.1

    y = depthwise_conv2d(x, weight, bias, stride=stride, padding=padding,
                         dilation=dilation)
    y = jax.block_until_ready(y)

    # Cross-check against XLA's grouped conv (same semantics as torch depthwise).
    y_ref = lax.conv_general_dilated(
        x, weight,
        window_strides=stride,
        padding=[(padding[0], padding[0]), (padding[1], padding[1])],
        rhs_dilation=dilation,
        dimension_numbers=("NCHW", "OIHW", "NCHW"),
        feature_group_count=C,
    ) + bias.reshape(1, C, 1, 1)

    assert y.shape == y_ref.shape
    assert jnp.allclose(y, y_ref, atol=1e-5, rtol=1e-5)
    print("KERNEL_OK")
</pallas_src>

<mosaic_0001>
module attributes {stable_mosaic.version = 11 : i64} {
  func.func @_dwconv_kernel(%arg0: i32, %arg1: i32, %arg2: memref<2x1x16x16xf32, #tpu.memory_space<vmem>>, %arg3: memref<36xf32, #tpu.memory_space<smem>>, %arg4: memref<4xf32, #tpu.memory_space<smem>>, %arg5: memref<2x1x16x16xf32, #tpu.memory_space<vmem>>, %arg6: memref<2x18x18xf32, #tpu.memory_space<vmem>>) attributes {dimension_semantics = [#tpu.dimension_semantics<parallel>, #tpu.dimension_semantics<parallel>], iteration_bounds = array<i64: 4, 1>, scalar_prefetch = 0 : i64, scratch_operands = 1 : i64, tpu.core_type = #tpu.core_type<tc>, window_params = [{transform_indices = @transform_0, window_bounds = array<i64: 2, 1, 16, 16>}, {transform_indices = @transform_1, window_bounds = array<i64: 36>}, {transform_indices = @transform_2, window_bounds = array<i64: 4>}, {transform_indices = @transform_3, window_bounds = array<i64: 2, 1, 16, 16>}]} {
    %cst = arith.constant 0.000000e+00 : f32
    %0 = vector.broadcast %cst : f32 to vector<2x1x18xf32>
    %c0 = arith.constant 0 : index
    %c0_0 = arith.constant 0 : index
    %c0_1 = arith.constant 0 : index
    %1 = vector.load %arg6[%c0, %c0_0, %c0_1] : memref<2x18x18xf32, #tpu.memory_space<vmem>>, vector<2x1x18xf32>
    tpu.vector_store %arg6[%c0, %c0_0, %c0_1], %0 {strides = array<i32>} : memref<2x18x18xf32, #tpu.memory_space<vmem>>, vector<2x1x18xf32>,
    %cst_2 = arith.constant 0.000000e+00 : f32
    %2 = vector.broadcast %cst_2 : f32 to vector<2x1x18xf32>
    %c0_3 = arith.constant 0 : index
    %c17 = arith.constant 17 : index
    %c0_4 = arith.constant 0 : index
    %3 = vector.load %arg6[%c0_3, %c17, %c0_4] : memref<2x18x18xf32, #tpu.memory_space<vmem>>, vector<2x1x18xf32>
    tpu.vector_store %arg6[%c0_3, %c17, %c0_4], %2 {strides = array<i32>} : memref<2x18x18xf32, #tpu.memory_space<vmem>>, vector<2x1x18xf32>,
    %cst_5 = arith.constant 0.000000e+00 : f32
    %4 = vector.broadcast %cst_5 : f32 to vector<2x18x1xf32>
    %c0_6 = arith.constant 0 : index
    %c0_7 = arith.constant 0 : index
    %c0_8 = arith.constant 0 : index
    %5 = vector.load %arg6[%c0_6, %c0_7, %c0_8] : memref<2x18x18xf32, #tpu.memory_space<vmem>>, vector<2x18x1xf32>
    tpu.vector_store %arg6[%c0_6, %c0_7, %c0_8], %4 {strides = array<i32>} : memref<2x18x18xf32, #tpu.memory_space<vmem>>, vector<2x18x1xf32>,
    %cst_9 = arith.constant 0.000000e+00 : f32
    %6 = vector.broadcast %cst_9 : f32 to vector<2x18x1xf32>
    %c0_10 = arith.constant 0 : index
    %c0_11 = arith.constant 0 : index
    %c17_12 = arith.constant 17 : index
    %7 = vector.load %arg6[%c0_10, %c0_11, %c17_12] : memref<2x18x18xf32, #tpu.memory_space<vmem>>, vector<2x18x1xf32>
    tpu.vector_store %arg6[%c0_10, %c0_11, %c17_12], %6 {strides = array<i32>} : memref<2x18x18xf32, #tpu.memory_space<vmem>>, vector<2x18x1xf32>,
    %c0_13 = arith.constant 0 : index
    %c0_14 = arith.constant 0 : index
    %c0_15 = arith.constant 0 : index
    %c0_16 = arith.constant 0 : index
    %8 = vector.load %arg2[%c0_13, %c0_14, %c0_15, %c0_16] : memref<2x1x16x16xf32, #tpu.memory_space<vmem>>, vector<2x1x16x16xf32>
    %9 = vector.shape_cast %8 : vector<2x1x16x16xf32> to vector<2x16x16xf32>
    %c0_17 = arith.constant 0 : index
    %c1 = arith.constant 1 : index
    %c1_18 = arith.constant 1 : index
    %10 = vector.load %arg6[%c0_17, %c1, %c1_18] : memref<2x18x18xf32, #tpu.memory_space<vmem>>, vector<2x16x16xf32>
    tpu.vector_store %arg6[%c0_17, %c1, %c1_18], %9 {strides = array<i32>} : memref<2x18x18xf32, #tpu.memory_space<vmem>>, vector<2x16x16xf32>,
    %c9_i32 = arith.constant 9 : i32
    %11 = arith.muli %arg0, %c9_i32 : i32
    %c0_i32 = arith.constant 0 : i32
    %12 = arith.addi %11, %c0_i32 : i32
    %13 = arith.index_cast %12 : i32 to index
    %14 = memref.load %arg3[%13] : memref<36xf32, #tpu.memory_space<smem>>
    %c9_i32_19 = arith.constant 9 : i32
    %15 = arith.muli %arg0, %c9_i32_19 : i32
    %c1_i32 = arith.constant 1 : i32
    %16 = arith.addi %15, %c1_i32 : i32
    %17 = arith.index_cast %16 : i32 to index
    %18 = memref.load %arg3[%17] : memref<36xf32, #tpu.memory_space<smem>>
    %c9_i32_20 = arith.constant 9 : i32
    %19 = arith.muli %arg0, %c9_i32_20 : i32
    %c2_i32 = arith.constant 2 : i32
    %20 = arith.addi %19, %c2_i32 : i32
    %21 = arith.index_cast %20 : i32 to index
    %22 = memref.load %arg3[%21] : memref<36xf32, #tpu.memory_space<smem>>
    %c9_i32_21 = arith.constant 9 : i32
    %23 = arith.muli %arg0, %c9_i32_21 : i32
    %c3_i32 = arith.constant 3 : i32
    %24 = arith.addi %23, %c3_i32 : i32
    %25 = arith.index_cast %24 : i32 to index
    %26 = memref.load %arg3[%25] : memref<36xf32, #tpu.memory_space<smem>>
    %c9_i32_22 = arith.constant 9 : i32
    %27 = arith.muli %arg0, %c9_i32_22 : i32
    %c4_i32 = arith.constant 4 : i32
    %28 = arith.addi %27, %c4_i32 : i32
    %29 = arith.index_cast %28 : i32 to index
    %30 = memref.load %arg3[%29] : memref<36xf32, #tpu.memory_space<smem>>
    %c9_i32_23 = arith.constant 9 : i32
    %31 = arith.muli %arg0, %c9_i32_23 : i32
    %c5_i32 = arith.constant 5 : i32
    %32 = arith.addi %31, %c5_i32 : i32
    %33 = arith.index_cast %32 : i32 to index
    %34 = memref.load %arg3[%33] : memref<36xf32, #tpu.memory_space<smem>>
    %c9_i32_24 = arith.constant 9 : i32
    %35 = arith.muli %arg0, %c9_i32_24 : i32
    %c6_i32 = arith.constant 6 : i32
    %36 = arith.addi %35, %c6_i32 : i32
    %37 = arith.index_cast %36 : i32 to index
    %38 = memref.load %arg3[%37] : memref<36xf32, #tpu.memory_space<smem>>
    %c9_i32_25 = arith.constant 9 : i32
    %39 = arith.muli %arg0, %c9_i32_25 : i32
    %c7_i32 = arith.constant 7 : i32
    %40 = arith.addi %39, %c7_i32 : i32
    %41 = arith.index_cast %40 : i32 to index
    %42 = memref.load %arg3[%41] : memref<36xf32, #tpu.memory_space<smem>>
    %c9_i32_26 = arith.constant 9 : i32
    %43 = arith.muli %arg0, %c9_i32_26 : i32
    %c8_i32 = arith.constant 8 : i32
    %44 = arith.addi %43, %c8_i32 : i32
    %45 = arith.index_cast %44 : i32 to index
    %46 = memref.load %arg3[%45] : memref<36xf32, #tpu.memory_space<smem>>
    %47 = arith.index_cast %arg0 : i32 to index
    %48 = memref.load %arg4[%47] : memref<4xf32, #tpu.memory_space<smem>>
    %c0_i32_27 = arith.constant 0 : i32
    %c2_i32_28 = arith.constant 2 : i32
    %49 = arith.addi %c0_i32_27, %c2_i32_28 : i32
    %c1_i32_29 = arith.constant 1 : i32
    scf.for %arg7 = %c0_i32_27 to %49 step %c1_i32_29  : i32 {
      %c1_i32_31 = arith.constant 1 : i32
      %50 = arith.muli %arg7, %c1_i32_31 : i32
      %c0_i32_32 = arith.constant 0 : i32
      %51 = arith.addi %c0_i32_32, %50 : i32
      %52 = vector.broadcast %48 : f32 to vector<16x16xf32>
      %53 = arith.index_cast %51 : i32 to index
      %c0_33 = arith.constant 0 : index
      %c0_34 = arith.constant 0 : index
      %54 = vector.load %arg6[%53, %c0_33, %c0_34] : memref<2x18x18xf32, #tpu.memory_space<vmem>>, vector<1x16x16xf32>
      %55 = vector.shape_cast %54 : vector<1x16x16xf32> to vector<16x16xf32>
      %56 = vector.broadcast %14 : f32 to vector<16x16xf32>
      %57 = arith.mulf %55, %56 : vector<16x16xf32>
      %58 = arith.addf %52, %57 : vector<16x16xf32>
      %59 = arith.index_cast %51 : i32 to index
      %c0_35 = arith.constant 0 : index
      %c1_36 = arith.constant 1 : index
      %60 = vector.load %arg6[%59, %c0_35, %c1_36] : memref<2x18x18xf32, #tpu.memory_space<vmem>>, vector<1x16x16xf32>
      %61 = vector.shape_cast %60 : vector<1x16x16xf32> to vector<16x16xf32>
      %62 = vector.broadcast %18 : f32 to vector<16x16xf32>
      %63 = arith.mulf %61, %62 : vector<16x16xf32>
      %64 = arith.addf %58, %63 : vector<16x16xf32>
      %65 = arith.index_cast %51 : i32 to index
      %c0_37 = arith.constant 0 : index
      %c2 = arith.constant 2 : index
      %66 = vector.load %arg6[%65, %c0_37, %c2] : memref<2x18x18xf32, #tpu.memory_space<vmem>>, vector<1x16x16xf32>
      %67 = vector.shape_cast %66 : vector<1x16x16xf32> to vector<16x16xf32>
      %68 = vector.broadcast %22 : f32 to vector<16x16xf32>
      %69 = arith.mulf %67, %68 : vector<16x16xf32>
      %70 = arith.addf %64, %69 : vector<16x16xf32>
      %71 = arith.index_cast %51 : i32 to index
      %c1_38 = arith.constant 1 : index
      %c0_39 = arith.constant 0 : index
      %72 = vector.load %arg6[%71, %c1_38, %c0_39] : memref<2x18x18xf32, #tpu.memory_space<vmem>>, vector<1x16x16xf32>
      %73 = vector.shape_cast %72 : vector<1x16x16xf32> to vector<16x16xf32>
      %74 = vector.broadcast %26 : f32 to vector<16x16xf32>
      %75 = arith.mulf %73, %74 : vector<16x16xf32>
      %76 = arith.addf %70, %75 : vector<16x16xf32>
      %77 = arith.index_cast %51 : i32 to index
      %c1_40 = arith.constant 1 : index
      %c1_41 = arith.constant 1 : index
      %78 = vector.load %arg6[%77, %c1_40, %c1_41] : memref<2x18x18xf32, #tpu.memory_space<vmem>>, vector<1x16x16xf32>
      %79 = vector.shape_cast %78 : vector<1x16x16xf32> to vector<16x16xf32>
      %80 = vector.broadcast %30 : f32 to vector<16x16xf32>
      %81 = arith.mulf %79, %80 : vector<16x16xf32>
      %82 = arith.addf %76, %81 : vector<16x16xf32>
      %83 = arith.index_cast %51 : i32 to index
      %c1_42 = arith.constant 1 : index
      %c2_43 = arith.constant 2 : index
      %84 = vector.load %arg6[%83, %c1_42, %c2_43] : memref<2x18x18xf32, #tpu.memory_space<vmem>>, vector<1x16x16xf32>
      %85 = vector.shape_cast %84 : vector<1x16x16xf32> to vector<16x16xf32>
      %86 = vector.broadcast %34 : f32 to vector<16x16xf32>
      %87 = arith.mulf %85, %86 : vector<16x16xf32>
      %88 = arith.addf %82, %87 : vector<16x16xf32>
      %89 = arith.index_cast %51 : i32 to index
      %c2_44 = arith.constant 2 : index
      %c0_45 = arith.constant 0 : index
      %90 = vector.load %arg6[%89, %c2_44, %c0_45] : memref<2x18x18xf32, #tpu.memory_space<vmem>>, vector<1x16x16xf32>
      %91 = vector.shape_cast %90 : vector<1x16x16xf32> to vector<16x16xf32>
      %92 = vector.broadcast %38 : f32 to vector<16x16xf32>
      %93 = arith.mulf %91, %92 : vector<16x16xf32>
      %94 = arith.addf %88, %93 : vector<16x16xf32>
      %95 = arith.index_cast %51 : i32 to index
      %c2_46 = arith.constant 2 : index
      %c1_47 = arith.constant 1 : index
      %96 = vector.load %arg6[%95, %c2_46, %c1_47] : memref<2x18x18xf32, #tpu.memory_space<vmem>>, vector<1x16x16xf32>
      %97 = vector.shape_cast %96 : vector<1x16x16xf32> to vector<16x16xf32>
      %98 = vector.broadcast %42 : f32 to vector<16x16xf32>
      %99 = arith.mulf %97, %98 : vector<16x16xf32>
      %100 = arith.addf %94, %99 : vector<16x16xf32>
      %101 = arith.index_cast %51 : i32 to index
      %c2_48 = arith.constant 2 : index
      %c2_49 = arith.constant 2 : index
      %102 = vector.load %arg6[%101, %c2_48, %c2_49] : memref<2x18x18xf32, #tpu.memory_space<vmem>>, vector<1x16x16xf32>
      %103 = vector.shape_cast %102 : vector<1x16x16xf32> to vector<16x16xf32>
      %104 = vector.broadcast %46 : f32 to vector<16x16xf32>
      %105 = arith.mulf %103, %104 : vector<16x16xf32>
      %106 = arith.addf %100, %105 : vector<16x16xf32>
      %107 = arith.index_cast %51 : i32 to index
      %c0_50 = arith.constant 0 : index
      %c0_51 = arith.constant 0 : index
      %c0_52 = arith.constant 0 : index
      %108 = vector.load %arg5[%107, %c0_50, %c0_51, %c0_52] : memref<2x1x16x16xf32, #tpu.memory_space<vmem>>, vector<1x1x16x16xf32>
      %109 = vector.shape_cast %108 : vector<1x1x16x16xf32> to vector<16x16xf32>
      %110 = vector.shape_cast %106 : vector<16x16xf32> to vector<1x1x16x16xf32>
      tpu.vector_store %arg5[%107, %c0_50, %c0_51, %c0_52], %110 {strides = array<i32>} : memref<2x1x16x16xf32, #tpu.memory_space<vmem>>, vector<1x1x16x16xf32>,
    }
    %c2_i32_30 = arith.constant 2 : i32
    return
  }
  func.func @transform_0(%arg0: i32, %arg1: i32) -> (i32, i32, i32, i32) {
    %c0_i32 = arith.constant 0 : i32
    %c0_i32_0 = arith.constant 0 : i32
    %c0_i32_1 = arith.constant 0 : i32
    return %arg1, %arg0, %c0_i32, %c0_i32_0 : i32, i32, i32, i32
  }
  func.func @transform_1(%arg0: i32, %arg1: i32) -> i32 {
    %c0_i32 = arith.constant 0 : i32
    %c0_i32_0 = arith.constant 0 : i32
    return %c0_i32 : i32
  }
  func.func @transform_2(%arg0: i32, %arg1: i32) -> i32 {
    %c0_i32 = arith.constant 0 : i32
    %c0_i32_0 = arith.constant 0 : i32
    return %c0_i32 : i32
  }
  func.func @transform_3(%arg0: i32, %arg1: i32) -> (i32, i32, i32, i32) {
    %c0_i32 = arith.constant 0 : i32
    %c0_i32_0 = arith.constant 0 : i32
    %c0_i32_1 = arith.constant 0 : i32
    return %arg1, %arg0, %c0_i32, %c0_i32_0 : i32, i32, i32, i32
  }
}

</mosaic_0001>

<llo_original>
// kernel: tpu_custom_call.1
$region0: #{tpu_custom_call.1}
  #allocation0 [shape = 'u32[]', space=smem, size = 0x4, offset = 0x4, fixed_abs, tag = 'smem constant byte address 0x4 - core index']
  #allocation1 [shape = 'u32[144,128]{1,0:T(1,128)}', space=vmem, size = 0x12000, scoped, tag = 'internal scratch']
  #allocation2 [shape = 'f32[2,18,18]{2,1,0:T(8,128)}', space=vmem, size = 0x6000, scoped, tag = 'scratch operand']
  #allocation11 [shape = 's32[]', space=sflag, size = 0x4, offset = 0, fixed_abs, tag = 'sflag constant byte address 0x0 - dummy sync flag']
  #allocation13 [shape = 's32[]', space=sflag, size = 0x4, offset = 0, fixed_abs, tag = 'sflag constant byte address 0x0 - dummy sync flag']
  %s0 = inlined_call_operand.hbm [shape: f32[2,4,16,16], index: 0, kind: input, shape index: {}]
  %s1 = inlined_call_operand.vmem [shape: f32[36], index: 1, kind: input, shape index: {}]
  %s2 = inlined_call_operand.vmem [shape: f32[4], index: 2, kind: input, shape index: {}]
  %s3 = inlined_call_operand.hbm [shape: f32[2,4,16,16], index: 3, kind: output, shape index: {}]
  %s4 = sld [smem:[#allocation0]]
  $region64: #{tpu_custom_call.1} parent=0
    _
  %s6 = ssub.s32 1, %s4
  %s7 = scalar_select 0, %s6, %s4
  $region1: #{tpu_custom_call.1} parent=0
    #allocation3 [shape = 'u8[32768]{0}', space=vmem, size = 0x8000, scoped, tag = 'input window, operand 0']
    #allocation4 [shape = 's32[2]{0}', space=sflag, size = 0x8, scoped, tag = 'scoped memory for tpu_custom_call.1']
    #allocation5 [shape = 's32[2]{0}', space=sflag, size = 0x8, scoped, tag = 'scoped memory for tpu_custom_call.1']
    #allocation6 [shape = 's32[2]{0}', space=sflag, size = 0x8, scoped, tag = 'scoped memory for tpu_custom_call.1']
    #allocation7 [shape = 'u8[512]{0}', space=smem, size = 0x200, scoped, tag = 'input window, operand 1, single buffered']
    #allocation8 [shape = 'u8[512]{0}', space=smem, size = 0x200, scoped, tag = 'input window, operand 2, single buffered']
    #allocation9 [shape = 's32[1]{0}', space=sflag, size = 0x4, scoped, tag = 'scoped memory for tpu_custom_call.1']
    #allocation10 [shape = 'u8[32768]{0}', space=vmem, size = 0x8000, scoped, tag = 'output window, operand 0']
    %8 = vsyncpa [#allocation4], 0
    %s9 = scalar_lea.sflag [#allocation4], 1
    %10 = vsyncpa %s9, 0
    %11 = vsyncpa [#allocation6], 0
    %12 = vsyncpa [#allocation9], 0
    %13 = vsyncpa [#allocation5], 0
    %s14 = scalar_lea.sflag [#allocation5], 1
    %15 = vsyncpa %s14, 0
    loop: start=0, step=1, limit=6
    $region2: #{tpu_custom_call.1} parent=1 // loop_pre_header
      _
    $region3: #{tpu_custom_call.1} parent=1 // loop_header
      %s17 = sphi 0, %s21
      %p18 = scmp.ge.s32.totalorder %s17, 6
      %s24 = sphi 0, %s36
      %s25 = sphi 0, %s32
      %s26 = sphi 0, %s24
      %s27 = sphi 0, %s25
      %s28 = sphi 0, %s26
      %s29 = sphi 0, %s27
      %s41 = sphi 0, %s43
      %s44 = sphi 0, %s41
      %s45 = sphi 0, %s44
      %s61 = sphi 0, %s45
      %s65 = sphi 0, %s65
      %s67 = sphi 0, %s65
      %s68 = sphi 0, %s67
      %s82 = sphi 0, %s68
      %s86 = sphi 0, %s86
      %s88 = sphi 0, %s86
      %s89 = sphi 0, %s88
      %s103 = sphi 0, %s89
      %s111 = sphi 0, %s113
      %s114 = sphi 0, %s111
      %s115 = sphi 0, %s114
      %s131 = sphi 0, %s115
    $region4: #{tpu_custom_call.1} parent=1 // loop_header_branch
      %20 = sbr.rel (%p18) target = $region8
    $region5: #{tpu_custom_call.1} parent=1 // loop_body
      %s22 = ssub.s32 %s17, 1
      %s23 = ssub.s32 %s17, 2
      %s30 = sadd.s32 1, %s25
      %p31 = scmp.ge.s32.totalorder %s30, 1
      %s32 = scalar_select %p31, 0, %s30
      %s33 = sadd.s32 1, %s24
      %s34 = scalar_select %p31, %s33, %s24
      %p35 = scmp.ge.s32.totalorder %s34, 4
      %s36 = scalar_select %p35, 0, %s34
      %s37 = ssub.s32 %s25, %s32
      %s38 = ssub.s32 %s24, %s36
      %s39 = sor.u32 %s37, %s38
      %p40 = scmp.eq.s32.totalorder %s39, 0
      %s42 = sadd.s32 %s41, 1
      %s43 = scalar_select %p40, %s41, %s42
      %p46 = pneg %p40
      %p47 = scmp.eq.s32.totalorder %s17, 3
      %p48 = por %p46, %p47
      %p49 = scmp.ne.s32.totalorder %s41, %s44
      %p50 = scmp.eq.s32.totalorder %s17, 0
      %p51 = por %p49, %p50
      %p52 = scmp.ne.s32.totalorder %s41, %s44
      %p53 = scmp.eq.s32.totalorder %s22, 3
      %p54 = por %p52, %p53
      %p55 = scmp.ne.s32.totalorder %s44, %s45
      %p56 = scmp.eq.s32.totalorder %s22, 0
      %p57 = por %p55, %p56
      %p58 = scmp.ne.s32.totalorder %s44, %s45
      %p59 = scmp.eq.s32.totalorder %s23, 3
      %p60 = por %p58, %p59
      %p62 = scmp.ne.s32.totalorder %s45, %s61
      %p63 = scmp.eq.s32.totalorder %s23, 0
      %p64 = por %p62, %p63
      %s66 = sadd.s32 %s65, 1
      %p69 = scmp.eq.s32.totalorder %s17, 3
      %p70 = scmp.ne.s32.totalorder %s65, %s67
      %p71 = scmp.eq.s32.totalorder %s17, 0
      %p72 = por %p70, %p71
      %p73 = scmp.ne.s32.totalorder %s65, %s67
      %p74 = scmp.eq.s32.totalorder %s22, 3
      %p75 = por %p73, %p74
      %p76 = scmp.ne.s32.totalorder %s67, %s68
      %p77 = scmp.eq.s32.totalorder %s22, 0
      %p78 = por %p76, %p77
      %p79 = scmp.ne.s32.totalorder %s67, %s68
      %p80 = scmp.eq.s32.totalorder %s23, 3
      %p81 = por %p79, %p80
      %p83 = scmp.ne.s32.totalorder %s68, %s82
      %p84 = scmp.eq.s32.totalorder %s23, 0
      %p85 = por %p83, %p84
      %s87 = sadd.s32 %s86, 1
      %p90 = scmp.eq.s32.totalorder %s17, 3
      %p91 = scmp.ne.s32.totalorder %s86, %s88
      %p92 = scmp.eq.s32.totalorder %s17, 0
      %p93 = por %p91, %p92
      %p94 = scmp.ne.s32.totalorder %s86, %s88
      %p95 = scmp.eq.s32.totalorder %s22, 3
      %p96 = por %p94, %p95
      %p97 = scmp.ne.s32.totalorder %s88, %s89
      %p98 = scmp.eq.s32.totalorder %s22, 0
      %p99 = por %p97, %p98
      %p100 = scmp.ne.s32.totalorder %s88, %s89
      %p101 = scmp.eq.s32.totalorder %s23, 3
      %p102 = por %p100, %p101
      %p104 = scmp.ne.s32.totalorder %s89, %s103
      %p105 = scmp.eq.s32.totalorder %s23, 0
      %p106 = por %p104, %p105
      %s107 = ssub.s32 %s25, %s32
      %s108 = ssub.s32 %s24, %s36
      %s109 = sor.u32 %s107, %s108
      %p110 = scmp.eq.s32.totalorder %s109, 0
      %s112 = sadd.s32 %s111, 1
      %s113 = scalar_select %p110, %s111, %s112
      %p116 = pneg %p110
      %p117 = scmp.eq.s32.totalorder %s17, 3
      %p118 = por %p116, %p117
      %p119 = scmp.ne.s32.totalorder %s111, %s114
      %p120 = scmp.eq.s32.totalorder %s17, 0
      %p121 = por %p119, %p120
      %p122 = scmp.ne.s32.totalorder %s111, %s114
      %p123 = scmp.eq.s32.totalorder %s22, 3
      %p124 = por %p122, %p123
      %p125 = scmp.ne.s32.totalorder %s114, %s115
      %p126 = scmp.eq.s32.totalorder %s22, 0
      %p127 = por %p125, %p126
      %p128 = scmp.ne.s32.totalorder %s114, %s115
      %p129 = scmp.eq.s32.totalorder %s23, 3
      %p130 = por %p128, %p129
      %p132 = scmp.ne.s32.totalorder %s115, %s131
      %p133 = scmp.eq.s32.totalorder %s23, 0
      %p134 = por %p132, %p133
      %p135 = scmp.le.s32.totalorder 1, %s17
      %p136 = scmp.lt.s32.totalorder %s17, 5
      %p137 = pnand %p135, %p136
      %p138 = pneg %p137
      // Predicated region
      $region9: #{tpu_custom_call.1} parent=5 // pred_check
        _
      $region10: #{tpu_custom_call.1} parent=5 // pred_check_branch
        %140 = sbr.rel (%p137) target = $region12
      $region11: #{tpu_custom_call.1} parent=5 // pred_region
        %s141 = ssub.s32 %s17, 1
        // Predicated region
        $region13: #{tpu_custom_call.1} parent=11 // pred_check
          %p142 = pneg %p78
        $region14: #{tpu_custom_call.1} parent=11 // pred_check_branch
          %144 = sbr.rel (%p142) target = $region16
        $region15: #{tpu_custom_call.1} parent=11 // pred_region
          %s146 = ssub.s32 16, 16
          %147 = vsyncadd [#allocation6], %s146
          %s149 = sshll.u32 %s1, 4
          %s150 = int_to_ptr.vmem [resolvable:$true] %s149
          %152 = dma.vmem_to_smem %s150, 16, [#allocation7], [#allocation6]
        $region16: #{tpu_custom_call.1} parent=11 // pred_fallthru
          _
        // Predicated region
        $region17: #{tpu_custom_call.1} parent=11 // pred_check
          %p153 = pneg %p99
        $region18: #{tpu_custom_call.1} parent=11 // pred_check_branch
          %155 = sbr.rel (%p153) target = $region20
        $region19: #{tpu_custom_call.1} parent=11 // pred_region
          %s157 = ssub.s32 16, 16
          %158 = vsyncadd [#allocation9], %s157
          %s160 = sshll.u32 %s2, 4
          %s161 = int_to_ptr.vmem [resolvable:$true] %s160
          %163 = dma.vmem_to_smem %s161, 16, [#allocation8], [#allocation9]
        $region20: #{tpu_custom_call.1} parent=11 // pred_fallthru
          _
      $region12: #{tpu_custom_call.1} parent=5 // pred_fallthru
        _
      %p164 = scmp.lt.s32.totalorder %s17, 4
      // Predicated region
      $region21: #{tpu_custom_call.1} parent=5 // pred_check
        %p165 = pneg %p164
      $region22: #{tpu_custom_call.1} parent=5 // pred_check_branch
        %167 = sbr.rel (%p165) target = $region24
      $region23: #{tpu_custom_call.1} parent=5 // pred_region
        // Predicated region
        $region25: #{tpu_custom_call.1} parent=23 // pred_check
          %p168 = pneg %p51
        $region26: #{tpu_custom_call.1} parent=23 // pred_check_branch
          %170 = sbr.rel (%p168) target = $region28
        $region27: #{tpu_custom_call.1} parent=23 // pred_region
          #allocation12 [shape = 'u32[6]{0}', space=smem, size = 0x18, scoped, tag = 'DMA stride descriptor']
          %s171 = sand.u32 %s41, 1
          %s172 = scalar_lea.sflag [#allocation4], %s171
          %s173 = sand.u32 %s41, 1
          %s174 = smul.addr %s173, 32
          %s175 = scalar_lea.vmem [#allocation3], %s174
          %s176 = smul.u32 2, %s25
          %s178 = ssub.s32 512, 512
          %179 = vsyncadd %s172, %s178
          %s180 = smul.addr %s24, 2
          %s181 = smul.addr %s176, 8
          %s182 = sadd.s32 %s180, %s181
          %s183 = smul.addr %s182, 128
          %s184 = scalar_lea.hbm %s0, %s183
          %s186 = sshll.u32 1, 14
          %s187 = sxor.u32 4294967295, %s186
          %s189 = sld [smem:[#allocation0]]
          %s190 = sadd.s32 2, %s189
          %s192 = sshll.u32 7, 26
          %s193 = sxor.u32 4294967295, %s192
          %s194 = sand.u32 0, %s193
          %s195 = sshll.u32 %s190, 26
          %s196 = sor.u32 %s194, %s195
          %s197 = sshll.u32 %s175, 4
          %s198 = int_to_ptr.vmem [resolvable:$true] %s197
          %204 = sst [smem:[#allocation12]] 1024
          %s205 = scalar_lea.smem [#allocation12], 1
          %206 = sst [smem:[%s205]] 256
          %s207 = scalar_lea.smem [#allocation12], 2
          %208 = sst [smem:[%s207]] 2
          %s209 = scalar_lea.smem [#allocation12], 3
          %210 = sst [smem:[%s209]] 128
          %s211 = scalar_lea.smem [#allocation12], 4
          %212 = sst [smem:[%s211]] 128
          %s213 = scalar_lea.smem [#allocation12], 5
          %214 = sst [smem:[%s213]] 8
          %216 = dma.general %s184, 512, %s198, %s172, [#allocation11], [#allocation12], %s196, 0
        $region28: #{tpu_custom_call.1} parent=23 // pred_fallthru
          _
      $region24: #{tpu_custom_call.1} parent=5 // pred_fallthru
        _
      %p217 = scmp.le.s32.totalorder 1, %s17
      %p218 = scmp.lt.s32.totalorder %s17, 5
      %p219 = pnand %p217, %p218
      %p220 = pneg %p219
      // Predicated region
      $region29: #{tpu_custom_call.1} parent=5 // pred_check
        _
      $region30: #{tpu_custom_call.1} parent=5 // pred_check_branch
        %222 = sbr.rel (%p219) target = $region32
      $region31: #{tpu_custom_call.1} parent=5 // pred_region
        %s223 = ssub.s32 %s17, 1
        %s224 = sand.u32 %s44, 1
        %s225 = scalar_lea.sflag [#allocation4], %s224
        %s226 = sand.u32 %s44, 1
        %s227 = smul.addr %s226, 32
        %s228 = scalar_lea.vmem [#allocation3], %s227
        // Predicated region
        $region33: #{tpu_custom_call.1} parent=31 // pred_check
          %p229 = pneg %p57
        $region34: #{tpu_custom_call.1} parent=31 // pred_check_branch
          %231 = sbr.rel (%p229) target = $region36
        $region35: #{tpu_custom_call.1} parent=31 // pred_region
          %232 = dma.done %s225, 512
        $region36: #{tpu_custom_call.1} parent=31 // pred_fallthru
          _
        // Predicated region
        $region37: #{tpu_custom_call.1} parent=31 // pred_check
          %p233 = pneg %p78
        $region38: #{tpu_custom_call.1} parent=31 // pred_check_branch
          %235 = sbr.rel (%p233) target = $region40
        $region39: #{tpu_custom_call.1} parent=31 // pred_region
          %236 = dma.done [#allocation6], 16
        $region40: #{tpu_custom_call.1} parent=31 // pred_fallthru
          _
        // Predicated region
        $region41: #{tpu_custom_call.1} parent=31 // pred_check
          %p237 = pneg %p99
        $region42: #{tpu_custom_call.1} parent=31 // pred_check_branch
          %239 = sbr.rel (%p237) target = $region44
        $region43: #{tpu_custom_call.1} parent=31 // pred_region
          %240 = dma.done [#allocation9], 16
        $region44: #{tpu_custom_call.1} parent=31 // pred_fallthru
          _
        %241 = sfence
        %s242 = sand.u32 %s44, 1
        %s243 = scalar_lea.sflag [#allocation4], %s242
        %s244 = sand.u32 %s44, 1
        %s245 = smul.addr %s244, 32
        %s246 = scalar_lea.vmem [#allocation3], %s245
        %p247 = pneg %p57
        %p248 = pneg %p54
        %p249 = pneg %p78
        %p250 = pneg %p75
        %p251 = pneg %p99
        %p252 = pneg %p96
        %p253 = pneg %p127
        %p254 = pneg %p124
        %s255 = sand.u32 %s114, 1
        %s256 = scalar_lea.sflag [#allocation5], %s255
        %s257 = sand.u32 %s114, 1
        %s258 = smul.addr %s257, 32
        %s259 = scalar_lea.vmem [#allocation10], %s258
        %s260 = smul.u32 2, %s27
        %s261 = smul.u32 2, %s27
        %vm262 = vcmask 139264
        %263 = vst.msk [vmem:[#allocation2] sm:$0x1] %vm262, 0.0
        %264 = vst.msk [vmem:[#allocation2 + $0x18] sm:$0x1] %vm262, 0.0
        %265 = vst.msk [vmem:[#allocation2 + $0x11] sm:$0x1] %vm262, 0.0
        %266 = vst.msk [vmem:[#allocation2 + $0x29] sm:$0x1] %vm262, 0.0
        %vm267 = vcmask 7168
        %268 = vst.msk [vmem:[#allocation2] sm:$0xff] %vm267, 0.0
        %269 = vst.msk [vmem:[#allocation2 + $0x8] sm:$0xff] %vm267, 0.0
        %vm270 = vcmask 1024
        %271 = vst.msk [vmem:[#allocation2 + $0x10] sm:$0x3] %vm270, 0.0
        %272 = vst.msk [vmem:[#allocation2 + $0x18] sm:$0xff] %vm267, 0.0
        %273 = vst.msk [vmem:[#allocation2 + $0x20] sm:$0xff] %vm267, 0.0
        %274 = vst.msk [vmem:[#allocation2 + $0x28] sm:$0x3] %vm270, 0.0
        %vm275 = vcmask 146568
        %276 = vst.msk [vmem:[#allocation2] sm:$0xff] %vm275, 0.0
        %277 = vst.msk [vmem:[#allocation2 + $0x8] sm:$0xff] %vm275, 0.0
        %vm278 = vcmask 140424
        %279 = vst.msk [vmem:[#allocation2 + $0x10] sm:$0x3] %vm278, 0.0
        %280 = vst.msk [vmem:[#allocation2 + $0x18] sm:$0xff] %vm275, 0.0
        %281 = vst.msk [vmem:[#allocation2 + $0x20] sm:$0xff] %vm275, 0.0
        %282 = vst.msk [vmem:[#allocation2 + $0x28] sm:$0x3] %vm278, 0.0
        %v283 = vld [vmem:[%s228] sm:$0xff]
        %v284 = vld [vmem:[%s228 + $0x8] sm:$0xff]
        %v285 = vld [vmem:[%s228 + $0x10] sm:$0xff]
        %v286 = vld [vmem:[%s228 + $0x18] sm:$0xff]
        %291 = vrot.lane.b32.xlu0 %v283, 1
        %v292 = vpop.permute.xlu0 %291
        %293 = vrot.lane.b32.xlu0 %v284, 1
        %v294 = vpop.permute.xlu0 %293
        %295 = vrot.lane.b32.xlu0 %v285, 1
        %v296 = vpop.permute.xlu0 %295
        %297 = vrot.lane.b32.xlu0 %v286, 1
        %v298 = vpop.permute.xlu0 %297
        %vm303 = vcmask 138248
        %304 = vst.msk [vmem:[#allocation2 + $0x1] sm:$0xff] %vm303, %v292
        %305 = vst.msk [vmem:[#allocation2 + $0x9] sm:$0xff] %vm303, %v294
        %306 = vst.msk [vmem:[#allocation2 + $0x19] sm:$0xff] %vm303, %v296
        %307 = vst.msk [vmem:[#allocation2 + $0x21] sm:$0xff] %vm303, %v298
        %s308 = smul.u32 %s26, 9
        %s309 = sld [smem:[#allocation7 + %s308]]
        %s310 = sadd.s32 %s308, 1
        %s311 = sld [smem:[#allocation7 + %s310]]
        %s312 = sadd.s32 %s308, 2
        %s313 = sld [smem:[#allocation7 + %s312]]
        %s314 = sadd.s32 %s308, 3
        %s315 = sld [smem:[#allocation7 + %s314]]
        %s316 = sadd.s32 %s308, 4
        %s317 = sld [smem:[#allocation7 + %s316]]
        %s318 = sadd.s32 %s308, 5
        %s319 = sld [smem:[#allocation7 + %s318]]
        %s320 = sadd.s32 %s308, 6
        %s321 = sld [smem:[#allocation7 + %s320]]
        %s322 = sadd.s32 %s308, 7
        %s323 = sld [smem:[#allocation7 + %s322]]
        %s324 = sadd.s32 %s308, 8
        %s325 = sld [smem:[#allocation7 + %s324]]
        %s326 = sld [smem:[#allocation8 + %s26]]
        loop: start=0, step=1, limit=2
        $region45: #{tpu_custom_call.1} parent=31 // loop_pre_header
          _
        $region46: #{tpu_custom_call.1} parent=31 // loop_header
          %s328 = sphi 0, %s332
          %p329 = scmp.ge.s32.totalorder %s328, 2
        $region47: #{tpu_custom_call.1} parent=31 // loop_header_branch
          %331 = sbr.rel (%p329) target = $region51
        $region48: #{tpu_custom_call.1} parent=31 // loop_body
          %v333 = vstv %s326
          %s334 = smul.u32 %s328, 24
          %s335 = scalar_lea.vmem [#allocation2], %s334
          %v336 = vld [vmem:[%s335] sm:$0xff]
          %v337 = vld [vmem:[%s335 + $0x8] sm:$0xff]
          %v338 = vstv %s309
          %v339 = vmul.f32 %v336, %v338
          %v340 = vmul.f32 %v337, %v338
          %v341 = vadd.f32 %v333, %v339
          %v342 = vadd.f32 %v333, %v340
          %v343 = vstv %s311
          %v344 = vmul.f32 %v336, %v343
          %v345 = vmul.f32 %v337, %v343
          %348 = vrot.lane.b32.xlu0 %v344, 127
          %v349 = vpop.permute.xlu0 %348
          %350 = vrot.lane.b32.xlu0 %v345, 127
          %v351 = vpop.permute.xlu0 %350
          %v354 = vadd.f32 %v341, %v349
          %v355 = vadd.f32 %v342, %v351
          %v356 = vstv %s313
          %v357 = vmul.f32 %v336, %v356
          %v358 = vmul.f32 %v337, %v356
          %361 = vrot.lane.b32.xlu0 %v357, 126
          %v362 = vpop.permute.xlu0 %361
          %363 = vrot.lane.b32.xlu0 %v358, 126
          %v364 = vpop.permute.xlu0 %363
          %v367 = vadd.f32 %v354, %v362
          %v368 = vadd.f32 %v355, %v364
          %v369 = vld [vmem:[%s335 + $0x1] sm:$0xff]
          %v370 = vld [vmem:[%s335 + $0x9] sm:$0xff]
          %v371 = vstv %s315
          %v372 = vmul.f32 %v369, %v371
          %v373 = vmul.f32 %v370, %v371
          %v374 = vadd.f32 %v367, %v372
          %v375 = vadd.f32 %v368, %v373
          %v376 = vstv %s317
          %v377 = vmul.f32 %v369, %v376
          %v378 = vmul.f32 %v370, %v376
          %381 = vrot.lane.b32.xlu0 %v377, 127
          %v382 = vpop.permute.xlu0 %381
          %383 = vrot.lane.b32.xlu0 %v378, 127
          %v384 = vpop.permute.xlu0 %383
          %v387 = vadd.f32 %v374, %v382
          %v388 = vadd.f32 %v375, %v384
          %v389 = vstv %s319
          %v390 = vmul.f32 %v369, %v389
          %v391 = vmul.f32 %v370, %v389
          %394 = vrot.lane.b32.xlu0 %v390, 126
          %v395 = vpop.permute.xlu0 %394
          %396 = vrot.lane.b32.xlu0 %v391, 126
          %v397 = vpop.permute.xlu0 %396
          %v400 = vadd.f32 %v387, %v395
          %v401 = vadd.f32 %v388, %v397
          %v402 = vld [vmem:[%s335 + $0x2] sm:$0xff]
          %v403 = vld [vmem:[%s335 + $0xa] sm:$0xff]
          %v404 = vstv %s321
          %v405 = vmul.f32 %v402, %v404
          %v406 = vmul.f32 %v403, %v404
          %v407 = vadd.f32 %v400, %v405
          %v408 = vadd.f32 %v401, %v406
          %v409 = vstv %s323
          %v410 = vmul.f32 %v402, %v409
          %v411 = vmul.f32 %v403, %v409
          %414 = vrot.lane.b32.xlu0 %v410, 127
          %v415 = vpop.permute.xlu0 %414
          %416 = vrot.lane.b32.xlu0 %v411, 127
          %v417 = vpop.permute.xlu0 %416
          %v420 = vadd.f32 %v407, %v415
          %v421 = vadd.f32 %v408, %v417
          %v422 = vstv %s325
          %v423 = vmul.f32 %v402, %v422
          %v424 = vmul.f32 %v403, %v422
          %427 = vrot.lane.b32.xlu0 %v423, 126
          %v428 = vpop.permute.xlu0 %427
          %429 = vrot.lane.b32.xlu0 %v424, 126
          %v430 = vpop.permute.xlu0 %429
          %v433 = vadd.f32 %v420, %v428
          %v434 = vadd.f32 %v421, %v430
          %s435 = smul.u32 %s328, 16
          %s436 = scalar_lea.vmem %s259, %s435 [#allocation10]
          %vm437 = vcmask 130048
          %438 = vst.msk [vmem:[%s436] sm:$0xff] %vm437, %v433
          %439 = vst.msk [vmem:[%s436 + $0x8] sm:$0xff] %vm437, %v434
        $region49: #{tpu_custom_call.1} parent=31 // loop_footer
          %s332 = sadd.s32 1, %s328
        $region50: #{tpu_custom_call.1} parent=31 // loop_footer_branch
          %327 = sbr.rel target = $region46
        $region51: #{tpu_custom_call.1} parent=31 // loop_exit
          _
        %s440 = sand.u32 %s114, 1
        %s441 = scalar_lea.sflag [#allocation5], %s440
        %s442 = sand.u32 %s114, 1
        %s443 = smul.addr %s442, 32
        %s444 = scalar_lea.vmem [#allocation10], %s443
        // Predicated region
        $region52: #{tpu_custom_call.1} parent=31 // pred_check
          %p445 = pneg %p124
        $region53: #{tpu_custom_call.1} parent=31 // pred_check_branch
          %447 = sbr.rel (%p445) target = $region55
        $region54: #{tpu_custom_call.1} parent=31 // pred_region
          #allocation14 [shape = 'u32[6]{0}', space=smem, size = 0x18, scoped, tag = 'DMA stride descriptor']
          %s448 = smul.u32 2, %s27
          %s450 = ssub.s32 512, 512
          %451 = vsyncadd %s441, %s450
          %s452 = smul.addr %s26, 2
          %s453 = smul.addr %s448, 8
          %s454 = sadd.s32 %s452, %s453
          %s455 = smul.addr %s454, 128
          %s456 = scalar_lea.hbm %s3, %s455
          %s458 = sshll.u32 1, 14
          %s459 = sxor.u32 4294967295, %s458
          %s462 = sshll.u32 7, 18
          %s463 = sxor.u32 4294967295, %s462
          %s464 = sand.u32 0, %s463
          %s466 = sor.u32 %s464, 0
          %s468 = sshll.u32 3, 24
          %s469 = sxor.u32 4294967295, %s468
          %s470 = sand.u32 %s466, %s469
          %s472 = sor.u32 %s470, 0
          %s473 = sshll.u32 %s444, 4
          %s474 = int_to_ptr.vmem [resolvable:$true] %s473
          %480 = sst [smem:[#allocation14]] 256
          %s481 = scalar_lea.smem [#allocation14], 1
          %482 = sst [smem:[%s481]] 1024
          %s483 = scalar_lea.smem [#allocation14], 2
          %484 = sst [smem:[%s483]] 2
          %s485 = scalar_lea.smem [#allocation14], 3
          %486 = sst [smem:[%s485]] 128
          %s487 = scalar_lea.smem [#allocation14], 4
          %488 = sst [smem:[%s487]] 128
          %s489 = scalar_lea.smem [#allocation14], 5
          %490 = sst [smem:[%s489]] 8
          %492 = dma.general %s474, 512, %s456, %s441, [#allocation13], [#allocation14], %s472, 0
        $region55: #{tpu_custom_call.1} parent=31 // pred_fallthru
          _
      $region32: #{tpu_custom_call.1} parent=5 // pred_fallthru
        _
      %p493 = scmp.le.s32.totalorder 2, %s17
      // Predicated region
      $region56: #{tpu_custom_call.1} parent=5 // pred_check
        %p494 = pneg %p493
      $region57: #{tpu_custom_call.1} parent=5 // pred_check_branch
        %496 = sbr.rel (%p494) target = $region59
      $region58: #{tpu_custom_call.1} parent=5 // pred_region
        %s497 = ssub.s32 %s17, 2
        // Predicated region
        $region60: #{tpu_custom_call.1} parent=58 // pred_check
          %p498 = pneg %p130
        $region61: #{tpu_custom_call.1} parent=58 // pred_check_branch
          %500 = sbr.rel (%p498) target = $region63
        $region62: #{tpu_custom_call.1} parent=58 // pred_region
          %s501 = sand.u32 %s115, 1
          %s502 = scalar_lea.sflag [#allocation5], %s501
          %s503 = sand.u32 %s115, 1
          %s504 = smul.addr %s503, 32
          %s505 = scalar_lea.vmem [#allocation10], %s504
          %506 = dma.done %s502, 512
        $region63: #{tpu_custom_call.1} parent=58 // pred_fallthru
          _
      $region59: #{tpu_custom_call.1} parent=5 // pred_fallthru
        _
    $region6: #{tpu_custom_call.1} parent=1 // loop_footer
      %s21 = sadd.s32 1, %s17
    $region7: #{tpu_custom_call.1} parent=1 // loop_footer_branch
      %16 = sbr.rel target = $region3
    $region8: #{tpu_custom_call.1} parent=1 // loop_exit
      _
    %507 = vsyncpa [#allocation4], 1
    %s508 = scalar_lea.sflag [#allocation4], 1
    %509 = vsyncpa %s508, 1
    %510 = vsyncpa [#allocation5], 1
    %s511 = scalar_lea.sflag [#allocation5], 1
    %512 = vsyncpa %s511, 1
    %513 = vsyncpa [#allocation6], 1
    %s514 = scalar_lea.sflag [#allocation6], 1
    %515 = vsyncpa %s514, 1
    %516 = vsyncpa [#allocation9], 1

</llo_original>
